<compile_context>
chip_gen: v7x
topology: tpu7x:2x2x1
jax: 0.10.0
libtpu: 0.0.40
codegen_flags: <defaults>
</compile_context>

<pallas_src>
import functools
import math

import jax
import jax.numpy as jnp
from jax.experimental import pallas as pl
from jax.experimental.pallas import tpu as pltpu

_LANES = 128
_TARGET_TILE_BYTES = 2 * 1024 * 1024     # per in/out pipeline buffer
_MIN_PALLAS_BYTES = 256 * 1024           # below this, plain XLA beats kernel launch cost
_MAX_MATMUL_N = 2048                     # resident-matrix path cap (VMEM / MXU-bound)

_SINGLE_BUFFERED_M_OK = True             # flips to False if pl.Buffered(1) is rejected


def _cdiv(a, b):
    return -(-a // b)


def _round_up(v, m):
    return _cdiv(v, m) * m


@functools.lru_cache(maxsize=None)
def _tpu_vmem_budget():
    """(usable VMEM budget, physical per-core VMEM capacity) in bytes."""
    try:
        cap = int(pltpu.get_tpu_info().vmem_capacity_bytes)
    except Exception:
        cap = 64 * 1024 * 1024           # conservative default: v7x per-TensorCore VMEM
    return (cap * 3) // 4, cap


def _mix_kernel(x_ref, m_ref, o_ref):
    """o = x @ M.  M has a constant index_map so it stays resident in VMEM."""
    o_ref[...] = jnp.dot(
        x_ref[...], m_ref[...], preferred_element_type=jnp.float32
    ).astype(o_ref.dtype)


def _build_mixing_matrix(prob, size):
    """size x size matrix M (f32) so that x @ M == permutation_mult_single(prob, x)."""
    n = size
    half = n // 2
    i = jnp.arange(n)
    s = jnp.where(i < half, 2 * i, 2 * i - n + 1)             # step-1 source (even/odd sep)
    r = jnp.where(i < half, half - 1 - i, 3 * half - 1 - i)   # step-2 source (reverse in half)
    sr = jnp.where(r < half, 2 * r, 2 * r - n + 1)            # step-1 source of step-2 source
    c = jnp.where(i < half, prob[1], prob[2])
    p0 = prob[0]

    def onehot_cols(idx):
        # result[j, i] = 1.0 if j == idx[i] else 0.0
        return jax.nn.one_hot(idx, n, dtype=jnp.float32).T

    return (((1.0 - c) * (1.0 - p0))[None, :] * onehot_cols(i)
            + ((1.0 - c) * p0)[None, :] * onehot_cols(s)
            + (c * (1.0 - p0))[None, :] * onehot_cols(r)
            + (c * p0)[None, :] * onehot_cols(sr))


def _choose_tiling(batch_g, n_eff, itemsize, m_bytes, budget):
    """Pick (rows-per-tile, grid-steps): byte-sized tiles, VMEM-bounded, megacore-friendly."""
    sub = 8 * (4 // itemsize)                          # sublane multiple for this dtype
    row_bytes = n_eff * itemsize
    avail = max(budget - m_bytes - (1 << 20), 1 << 20)
    max_rows_vmem = max((avail // (4 * row_bytes)) // sub * sub, sub)   # 2 in + 2 out bufs
    target_rows = max((_TARGET_TILE_BYTES // row_bytes) // sub * sub, sub)
    tb = int(min(max_rows_vmem, target_rows))

    steps = _cdiv(batch_g, tb)
    if batch_g >= 4 * sub:
        # v7x megacore: >=4 and an even number of grid steps so both cores
        # get balanced, double-buffered work.
        steps = max(steps, 4)
        if steps % 2:
            steps += 1
    tb = min(tb, max(sub, _round_up(_cdiv(batch_g, steps), sub)))
    return tb, steps


def _apply_mix_pallas(x2d, mix):
    """out = x2d @ mix via the Pallas kernel (mix VMEM-resident across the grid)."""
    global _SINGLE_BUFFERED_M_OK
    batch, n = x2d.shape
    dtype = x2d.dtype
    itemsize = jnp.dtype(dtype).itemsize
    budget, cap = _tpu_vmem_budget()

    # Lane-densify small sizes: pack 128//n rows into one 128-lane row and make
    # the mixing matrix block-diagonal (kron(I_group, mix)).
    if n < _LANES:
        group = _LANES // n
        n_eff = group * n
        mix_eff = jnp.kron(jnp.eye(group, dtype=mix.dtype), mix)
    else:
        group = 1
        n_eff = n
        mix_eff = mix

    m_bytes = n_eff * n_eff * itemsize                 # one resident copy of M
    batch_g = _cdiv(batch, group)
    tb, steps = _choose_tiling(batch_g, n_eff, itemsize, m_bytes, budget)
    batch_eff = tb * steps

    pad_rows = batch_eff * group - batch
    if pad_rows:
        x2d = jnp.concatenate([x2d, jnp.zeros((pad_rows, n), dtype)], axis=0)
    x_eff = x2d.reshape(batch_eff, n_eff)

    def call(m_buffers):
        m_kwargs = {"pipeline_mode": pl.Buffered(1)} if m_buffers == 1 else {}
        need = 4 * tb * n_eff * itemsize + m_buffers * m_bytes
        return pl.pallas_call(
            _mix_kernel,
            out_shape=jax.ShapeDtypeStruct((batch_eff, n_eff), dtype),
            grid_spec=pltpu.PrefetchScalarGridSpec(
                num_scalar_prefetch=0,
                grid=(steps,),
                in_specs=[
                    pl.BlockSpec((tb, n_eff), lambda i: (i, 0)),
                    pl.BlockSpec((n_eff, n_eff), lambda i: (0, 0), **m_kwargs),
                ],
                out_specs=pl.BlockSpec((tb, n_eff), lambda i: (i, 0)),
            ),
            compiler_params=pltpu.CompilerParams(
                dimension_semantics=("parallel",),
                vmem_limit_bytes=int(min(need + (8 << 20), cap)),
            ),
        )(x_eff, mix_eff)

    if _SINGLE_BUFFERED_M_OK:
        try:
            out_eff = call(1)                 # single-buffered resident M
        except Exception:                     # Buffered(1) rejected -> default buffering
            _SINGLE_BUFFERED_M_OK = False
            out_eff = call(2)
    else:
        out_eff = call(2)

    out = out_eff.reshape(batch_eff * group, n)
    if pad_rows:
        out = out[:batch]
    return out


def permutation_mult_single_xla(prob, x):
    """Pure-JAX mirror of PyTorch permutation_mult_single (reference + fallback path)."""
    prob = prob.astype(jnp.float32)
    orig_dtype = x.dtype
    xf = x.astype(jnp.float32)
    if x.ndim == 3:                                        # complex: (batch, n, 2)
        batch, n, _ = x.shape
        permuted = xf.reshape(batch, n // 2, 2, 2).transpose(0, 2, 1, 3).reshape(batch, n, 2)
        out = (1.0 - prob[0]) * xf + prob[0] * permuted
        out = out.reshape(batch, 2, n // 2, 2)
        out_rev = out[:, :, ::-1, :]
        p12 = prob[1:].reshape(1, 2, 1, 1)
        out = (1.0 - p12) * out + p12 * out_rev
        return out.reshape(batch, n, 2).astype(orig_dtype)
    batch, n = x.shape
    permuted = xf.reshape(batch, n // 2, 2).transpose(0, 2, 1).reshape(batch, n)
    out = (1.0 - prob[0]) * xf + prob[0] * permuted
    out = out.reshape(batch, 2, n // 2)
    out_rev = out[:, :, ::-1]
    p12 = prob[1:].reshape(1, 2, 1)
    out = (1.0 - p12) * out + p12 * out_rev
    return out.reshape(batch, n).astype(orig_dtype)


def permutation_factor_forward(logit, x, *, min_pallas_bytes=_MIN_PALLAS_BYTES):
    """PermutationFactor.forward.  x: (batch, size) real or (batch, size, 2) complex."""
    prob = jax.nn.sigmoid(logit.astype(jnp.float32))

    is_complex = x.ndim == 3
    if is_complex:
        assert x.shape[-1] == 2
        batch, size = x.shape[0], x.shape[1]
        n_flat = 2 * size
    else:
        batch, size = x.shape
        n_flat = size
    assert size == 1 << int(math.ceil(math.log2(size))), "size must be a power of 2"

    n_eff = max(n_flat, _LANES)                        # lane-densified matmul width
    budget, _ = _tpu_vmem_budget()
    total_bytes = x.size * jnp.dtype(x.dtype).itemsize
    use_pallas = (
        total_bytes >= min_pallas_bytes                # launch overhead dominates below
        and n_eff <= _MAX_MATMUL_N                     # resident-M path: fits VMEM,
        and n_eff * n_eff * 4 <= budget // 2           # stays (mostly) HBM-bound
    )
    if not use_pallas:
        # TODO(synk): Pallas lane-shuffle kernel (strided even/odd deinterleave +
        # in-half reverse + VPU weighted adds) for size > _MAX_MATMUL_N; those
        # sizes currently run the memory-bound 4-term mix in plain XLA.
        return permutation_mult_single_xla(prob, x)

    # Keep the input's own (<=32-bit float) dtype end-to-end; MXU accumulates in f32.
    if x.dtype in (jnp.float32, jnp.bfloat16, jnp.float16):
        dtype = x.dtype
    else:
        dtype = jnp.float32

    mix = _build_mixing_matrix(prob, size)
    if is_complex:
        # (b, n, 2) -> (b, 2n) is a free contiguous reshape; the real-linear map
        # acting per component becomes kron(M, I2) on the flattened layout.
        mix = jnp.kron(mix, jnp.eye(2, dtype=jnp.float32))
        x2d = x.reshape(batch, n_flat)
    else:
        x2d = x

    out2d = _apply_mix_pallas(x2d.astype(dtype), mix.astype(dtype))
    out = out2d.reshape(batch, size, 2) if is_complex else out2d
    return out.astype(x.dtype)


if __name__ == "__main__":
    key = jax.random.PRNGKey(0)
    k_logit, k1, k2, k3, k4 = jax.random.split(key, 5)

    # nn.Parameter(torch.randn(3)) analogue.
    logit = jax.random.normal(k_logit, (3,), dtype=jnp.float32)
    prob = jax.nn.sigmoid(logit)

    # 1) tiny real input: default call takes the XLA small-problem bypass
    x_small = jax.random.normal(k1, (16, 16), dtype=jnp.float32)
    out_bypass = jax.block_until_ready(permutation_factor_forward(logit, x_small))
    ref_small = permutation_mult_single_xla(prob, x_small)
    assert out_bypass.shape == x_small.shape and out_bypass.dtype == x_small.dtype
    assert jnp.allclose(out_bypass, ref_small, atol=1e-5, rtol=1e-5), "bypass mismatch"

    # 2) same input forced through the Pallas lane-densified kernel (size < 128)
    out_small = jax.block_until_ready(
        permutation_factor_forward(logit, x_small, min_pallas_bytes=0))
    assert jnp.allclose(out_small, ref_small, atol=1e-5, rtol=1e-5), "small real mismatch"

    # 3) size >= 128, batch not tile-aligned (exercises pad-to-tile + multi-step grid)
    x_big = jax.random.normal(k2, (72, 256), dtype=jnp.float32)
    out_big = jax.block_until_ready(
        permutation_factor_forward(logit, x_big, min_pallas_bytes=0))
    ref_big = permutation_mult_single_xla(prob, x_big)
    assert out_big.shape == x_big.shape
    assert jnp.allclose(out_big, ref_big, atol=1e-5, rtol=1e-5), "large real mismatch"

    # 4) bf16 input stays bf16 end-to-end through the kernel (f32 accumulation)
    x_bf16 = jax.random.normal(k3, (64, 128), dtype=jnp.bfloat16)
    out_bf16 = jax.block_until_ready(
        permutation_factor_forward(logit, x_bf16, min_pallas_bytes=0))
    ref_bf16 = permutation_mult_single_xla(prob, x_bf16.astype(jnp.float32))
    assert out_bf16.dtype == jnp.bfloat16
    assert jnp.allclose(out_bf16.astype(jnp.float32), ref_bf16,
                        atol=1e-1, rtol=5e-2), "bf16 mismatch"

    # 5) complex path (batch, size, 2): folded to (batch, 2*size) with kron(M, I2)
    x_cplx = jax.random.normal(k4, (8, 16, 2), dtype=jnp.float32)
    out_cplx = jax.block_until_ready(
        permutation_factor_forward(logit, x_cplx, min_pallas_bytes=0))
    ref_cplx = permutation_mult_single_xla(prob, x_cplx)
    assert out_cplx.shape == x_cplx.shape
    assert jnp.allclose(out_cplx, ref_cplx, atol=1e-5, rtol=1e-5), "complex mismatch"

    print("KERNEL_OK")
</pallas_src>

<mosaic_0001>
module attributes {stable_mosaic.version = 11 : i64} {
  func.func @_mix_kernel(%arg0: i32, %arg1: memref<8x128xf32, #tpu.memory_space<vmem>>, %arg2: memref<128x128xf32, #tpu.memory_space<vmem>>, %arg3: memref<8x128xf32, #tpu.memory_space<vmem>>) attributes {dimension_semantics = [#tpu.dimension_semantics<parallel>], iteration_bounds = array<i64: 1>, scalar_prefetch = 0 : i64, scratch_operands = 0 : i64, tpu.core_type = #tpu.core_type<tc>, window_params = [{transform_indices = @transform_0, window_bounds = array<i64: 8, 128>}, {pipeline_mode = #tpu.pipeline_mode<synchronous>, transform_indices = @transform_1, window_bounds = array<i64: 128, 128>}, {transform_indices = @transform_2, window_bounds = array<i64: 8, 128>}]} {
    %c0 = arith.constant 0 : index
    %c0_0 = arith.constant 0 : index
    %0 = vector.load %arg1[%c0, %c0_0] : memref<8x128xf32, #tpu.memory_space<vmem>>, vector<8x128xf32>
    %c0_1 = arith.constant 0 : index
    %c0_2 = arith.constant 0 : index
    %1 = vector.load %arg2[%c0_1, %c0_2] : memref<128x128xf32, #tpu.memory_space<vmem>>, vector<128x128xf32>
    %cst = arith.constant dense<0.000000e+00> : vector<8x128xf32>
    %2 = tpu.matmul %0, %1, %cst {dimension_numbers = #tpu.dot_dimension_numbers<[1], [0], [0], [1], [0, 0, 1, 1], [], []>} : vector<8x128xf32>, vector<128x128xf32>, vector<8x128xf32> -> vector<8x128xf32>
    %c0_3 = arith.constant 0 : index
    %c0_4 = arith.constant 0 : index
    %3 = vector.load %arg3[%c0_3, %c0_4] : memref<8x128xf32, #tpu.memory_space<vmem>>, vector<8x128xf32>
    tpu.vector_store %arg3[%c0_3, %c0_4], %2 {strides = array<i32>} : memref<8x128xf32, #tpu.memory_space<vmem>>, vector<8x128xf32>,
    return
  }
  func.func @transform_0(%arg0: i32) -> (i32, i32) {
    %c0_i32 = arith.constant 0 : i32
    %c0_i32_0 = arith.constant 0 : i32
    return %arg0, %c0_i32 : i32, i32
  }
  func.func @transform_1(%arg0: i32) -> (i32, i32) {
    %c0_i32 = arith.constant 0 : i32
    %c0_i32_0 = arith.constant 0 : i32
    %c0_i32_1 = arith.constant 0 : i32
    return %c0_i32, %c0_i32_0 : i32, i32
  }
  func.func @transform_2(%arg0: i32) -> (i32, i32) {
    %c0_i32 = arith.constant 0 : i32
    %c0_i32_0 = arith.constant 0 : i32
    return %arg0, %c0_i32 : i32, i32
  }
}

module attributes {stable_mosaic.version = 11 : i64} {
  func.func @_mix_kernel(%arg0: i32, %arg1: memref<8x128xf32, #tpu.memory_space<vmem>>, %arg2: memref<128x128xf32, #tpu.memory_space<vmem>>, %arg3: memref<8x128xf32, #tpu.memory_space<vmem>>) attributes {dimension_semantics = [#tpu.dimension_semantics<parallel>], iteration_bounds = array<i64: 1>, scalar_prefetch = 0 : i64, scratch_operands = 0 : i64, tpu.core_type = #tpu.core_type<tc>, window_params = [{transform_indices = @transform_0, window_bounds = array<i64: 8, 128>}, {pipeline_mode = #tpu.pipeline_mode<synchronous>, transform_indices = @transform_1, window_bounds = array<i64: 128, 128>}, {transform_indices = @transform_2, window_bounds = array<i64: 8, 128>}]} {
    %c0 = arith.constant 0 : index
    %c0_0 = arith.constant 0 : index
    %0 = vector.load %arg1[%c0, %c0_0] : memref<8x128xf32, #tpu.memory_space<vmem>>, vector<8x128xf32>
    %c0_1 = arith.constant 0 : index
    %c0_2 = arith.constant 0 : index
    %1 = vector.load %arg2[%c0_1, %c0_2] : memref<128x128xf32, #tpu.memory_space<vmem>>, vector<128x128xf32>
    %cst = arith.constant dense<0.000000e+00> : vector<8x128xf32>
    %2 = tpu.matmul %0, %1, %cst {dimension_numbers = #tpu.dot_dimension_numbers<[1], [0], [0], [1], [0, 0, 1, 1], [], []>} : vector<8x128xf32>, vector<128x128xf32>, vector<8x128xf32> -> vector<8x128xf32>
    %c0_3 = arith.constant 0 : index
    %c0_4 = arith.constant 0 : index
    %3 = vector.load %arg3[%c0_3, %c0_4] : memref<8x128xf32, #tpu.memory_space<vmem>>, vector<8x128xf32>
    tpu.vector_store %arg3[%c0_3, %c0_4], %2 {strides = array<i32>} : memref<8x128xf32, #tpu.memory_space<vmem>>, vector<8x128xf32>,
    return
  }
  func.func @transform_0(%arg0: i32) -> (i32, i32) {
    %c0_i32 = arith.constant 0 : i32
    %c0_i32_0 = arith.constant 0 : i32
    return %arg0, %c0_i32 : i32, i32
  }
  func.func @transform_1(%arg0: i32) -> (i32, i32) {
    %c0_i32 = arith.constant 0 : i32
    %c0_i32_0 = arith.constant 0 : i32
    %c0_i32_1 = arith.constant 0 : i32
    return %c0_i32, %c0_i32_0 : i32, i32
  }
  func.func @transform_2(%arg0: i32) -> (i32, i32) {
    %c0_i32 = arith.constant 0 : i32
    %c0_i32_0 = arith.constant 0 : i32
    return %arg0, %c0_i32 : i32, i32
  }
}

</mosaic_0001>

<llo_original>
// kernel: tpu_custom_call.1
$region0: #{tpu_custom_call.1}
  #allocation0 [shape = 'u32[]', space=smem, size = 0x4, offset = 0x4, fixed_abs, tag = 'smem constant byte address 0x4 - core index']
  #allocation1 [shape = 'u32[144,128]{1,0:T(1,128)}', space=vmem, size = 0x12000, scoped, tag = 'internal scratch']
  %s0 = inlined_call_operand.hbm [shape: f32[8,128], index: 0, kind: input, shape index: {}]
  %s1 = inlined_call_operand.hbm [shape: f32[128,128], index: 1, kind: input, shape index: {}]
  %s2 = inlined_call_operand.hbm [shape: f32[8,128], index: 2, kind: output, shape index: {}]
  %s3 = sld [smem:[#allocation0]]
  $region26: #{tpu_custom_call.1} parent=0
    _
  %s5 = ssub.s32 1, %s3
  %s6 = scalar_select 0, %s5, %s3
  $region1: #{tpu_custom_call.1} parent=0
    #allocation2 [shape = 'u8[4096]{0}', space=vmem, size = 0x1000, scoped, tag = 'input window, operand 0, single buffered']
    #allocation3 [shape = 's32[1]{0}', space=sflag, size = 0x4, scoped, tag = 'scoped memory for tpu_custom_call.1']
    #allocation4 [shape = 's32[1]{0}', space=sflag, size = 0x4, scoped, tag = 'scoped memory for tpu_custom_call.1']
    #allocation5 [shape = 'u8[65536]{0}', space=vmem, size = 0x10000, scoped, tag = 'input window, operand 1, single buffered']
    #allocation6 [shape = 's32[1]{0}', space=sflag, size = 0x4, scoped, tag = 'scoped memory for tpu_custom_call.1']
    #allocation7 [shape = 'u8[4096]{0}', space=vmem, size = 0x1000, scoped, tag = 'output window, operand 0, single buffered']
    %7 = vsyncpa [#allocation3], 0
    %8 = vsyncpa [#allocation6], 0
    %9 = vsyncpa [#allocation4], 0
    // Predicated region
    $region2: #{tpu_custom_call.1} parent=1 // pred_check
      _
    $region3: #{tpu_custom_call.1} parent=1 // pred_check_branch
      %11 = sbr.rel (0) target = $region5
    $region4: #{tpu_custom_call.1} parent=1 // pred_region
      %s13 = ssub.s32 128, 128
      %14 = vsyncadd [#allocation3], %s13
      %s16 = sshll.u32 [#allocation2], 4
      %s17 = int_to_ptr.vmem [resolvable:$true] %s16
      %19 = dma.hbm_to_vmem [thread:$0]  %s0, 128, %s17, [#allocation3]
    $region5: #{tpu_custom_call.1} parent=1 // pred_fallthru
      _
    // Predicated region
    $region6: #{tpu_custom_call.1} parent=1 // pred_check
      _
    $region7: #{tpu_custom_call.1} parent=1 // pred_check_branch
      %21 = sbr.rel (0) target = $region9
    $region8: #{tpu_custom_call.1} parent=1 // pred_region
      %s23 = ssub.s32 2048, 2048
      %24 = vsyncadd [#allocation6], %s23
      %s25 = sshll.u32 [#allocation5], 4
      %s26 = int_to_ptr.vmem [resolvable:$true] %s25
      %31 = dma.hbm_to_vmem [thread:$0]  %s1, 2048, %s26, [#allocation6], 128, 128, 8
    $region9: #{tpu_custom_call.1} parent=1 // pred_fallthru
      _
    // Predicated region
    $region10: #{tpu_custom_call.1} parent=1 // pred_check
      _
    $region11: #{tpu_custom_call.1} parent=1 // pred_check_branch
      %33 = sbr.rel (0) target = $region13
    $region12: #{tpu_custom_call.1} parent=1 // pred_region
      %34 = dma.done [#allocation3], 128
    $region13: #{tpu_custom_call.1} parent=1 // pred_fallthru
      _
    // Predicated region
    $region14: #{tpu_custom_call.1} parent=1 // pred_check
      _
    $region15: #{tpu_custom_call.1} parent=1 // pred_check_branch
      %36 = sbr.rel (0) target = $region17
    $region16: #{tpu_custom_call.1} parent=1 // pred_region
      %37 = dma.done [#allocation6], 2048
    $region17: #{tpu_custom_call.1} parent=1 // pred_fallthru
      _
    %v38 = vld [vmem:[#allocation2] sm:$0xff]
    %v39 = vld [vmem:[#allocation5] sm:$0xff]
    %v40 = vld [vmem:[#allocation5 + $0x8] sm:$0xff]
    %v41 = vld [vmem:[#allocation5 + $0x10] sm:$0xff]
    %v42 = vld [vmem:[#allocation5 + $0x18] sm:$0xff]
    %v43 = vld [vmem:[#allocation5 + $0x20] sm:$0xff]
    %v44 = vld [vmem:[#allocation5 + $0x28] sm:$0xff]
    %v45 = vld [vmem:[#allocation5 + $0x30] sm:$0xff]
    %v46 = vld [vmem:[#allocation5 + $0x38] sm:$0xff]
    %v47 = vld [vmem:[#allocation5 + $0x40] sm:$0xff]
    %v48 = vld [vmem:[#allocation5 + $0x48] sm:$0xff]
    %v49 = vld [vmem:[#allocation5 + $0x50] sm:$0xff]
    %v50 = vld [vmem:[#allocation5 + $0x58] sm:$0xff]
    %v51 = vld [vmem:[#allocation5 + $0x60] sm:$0xff]
    %v52 = vld [vmem:[#allocation5 + $0x68] sm:$0xff]
    %v53 = vld [vmem:[#allocation5 + $0x70] sm:$0xff]
    %v54 = vld [vmem:[#allocation5 + $0x78] sm:$0xff]
    %55 = vmatprep.subr.mxu0 0.0
    %56 = vmatpush1.msra.mxu0 %v39
    %57 = vmatprep.subr.mxu0 0.0
    %58 = vmatpush1.msra.mxu0 %v40
    %59 = vmatprep.subr.mxu0 0.0
    %60 = vmatpush1.msra.mxu0 %v41
    %61 = vmatprep.subr.mxu0 0.0
    %62 = vmatpush1.msra.mxu0 %v42
    %63 = vmatprep.subr.mxu0 0.0
    %64 = vmatpush1.msra.mxu0 %v43
    %65 = vmatprep.subr.mxu0 0.0
    %66 = vmatpush1.msra.mxu0 %v44
    %67 = vmatprep.subr.mxu0 0.0
    %68 = vmatpush1.msra.mxu0 %v45
    %69 = vmatprep.subr.mxu0 0.0
    %70 = vmatpush1.msra.mxu0 %v46
    %71 = vmatprep.subr.mxu0 0.0
    %72 = vmatpush1.msra.mxu0 %v47
    %73 = vmatprep.subr.mxu0 0.0
    %74 = vmatpush1.msra.mxu0 %v48
    %75 = vmatprep.subr.mxu0 0.0
    %76 = vmatpush1.msra.mxu0 %v49
    %77 = vmatprep.subr.mxu0 0.0
    %78 = vmatpush1.msra.mxu0 %v50
    %79 = vmatprep.subr.mxu0 0.0
    %80 = vmatpush1.msra.mxu0 %v51
    %81 = vmatprep.subr.mxu0 0.0
    %82 = vmatpush1.msra.mxu0 %v52
    %83 = vmatprep.subr.mxu0 0.0
    %84 = vmatpush1.msra.mxu0 %v53
    %85 = vmatprep.subr.mxu0 0.0
    %86 = vmatpush1.msra.mxu0 %v54
    %87 = vmatprep.subr.mxu0 0.0
    %88 = vmatpush1.msra.mxu0 0.0
    %89 = vmatprep.subr.mxu0 0.0
    %90 = vmatpush1.msra.mxu0 0.0
    %91 = vmatprep.subr.mxu0 0.0
    %92 = vmatpush1.msra.mxu0 0.0
    %93 = vmatprep.subr.mxu0 0.0
    %94 = vmatpush1.msra.mxu0 0.0
    %95 = vmatprep.subr.mxu0 0.0
    %96 = vmatpush1.msra.mxu0 0.0
    %97 = vmatprep.subr.mxu0 0.0
    %98 = vmatpush1.msra.mxu0 0.0
    %99 = vmatprep.subr.mxu0 0.0
    %100 = vmatpush1.msra.mxu0 0.0
    %101 = vmatprep.subr.mxu0 0.0
    %102 = vmatpush1.msra.mxu0 0.0
    %103 = vmatprep.subr.mxu0 0.0
    %104 = vmatpush1.msra.mxu0 0.0
    %105 = vmatprep.subr.mxu0 0.0
    %106 = vmatpush1.msra.mxu0 0.0
    %107 = vmatprep.subr.mxu0 0.0
    %108 = vmatpush1.msra.mxu0 0.0
    %109 = vmatprep.subr.mxu0 0.0
    %110 = vmatpush1.msra.mxu0 0.0
    %111 = vmatprep.subr.mxu0 0.0
    %112 = vmatpush1.msra.mxu0 0.0
    %113 = vmatprep.subr.mxu0 0.0
    %114 = vmatpush1.msra.mxu0 0.0
    %115 = vmatprep.subr.mxu0 0.0
    %116 = vmatpush1.msra.mxu0 0.0
    %117 = vmatprep.subr.mxu0 0.0
    %118 = vmatpush1.msra.mxu0 0.0
    %119 = vmatprep.mubr.f32.mxu0 0.0
    %120 = vmatmul.mubr.f32.gmra.mrb[0].mxu0 %v38
    %v121 = vpop.f32.mrb[0].mxu0
    %v122 = vadd.f32 0.0, %v121
    %v123 = vpop.f32.mrb[0].mxu0
    %124 = vdwg.mxu0
    %125 = vst [vmem:[#allocation7] sm:$0xff] %v122
    // Predicated region
    $region18: #{tpu_custom_call.1} parent=1 // pred_check
      _
    $region19: #{tpu_custom_call.1} parent=1 // pred_check_branch
      %127 = sbr.rel (0) target = $region21
    $region20: #{tpu_custom_call.1} parent=1 // pred_region
      %s129 = ssub.s32 128, 128
      %130 = vsyncadd [#allocation4], %s129
      %s132 = sshll.u32 [#allocation7], 4
      %s133 = int_to_ptr.vmem [resolvable:$true] %s132
      %135 = dma.vmem_to_hbm [thread:$0]  %s133, 128, %s2, [#allocation4]
    $region21: #{tpu_custom_call.1} parent=1 // pred_fallthru
      _
    // Predicated region
    $region22: #{tpu_custom_call.1} parent=1 // pred_check
      _
    $region23: #{tpu_custom_call.1} parent=1 // pred_check_branch
      %137 = sbr.rel (0) target = $region25
    $region24: #{tpu_custom_call.1} parent=1 // pred_region
      %138 = dma.done [#allocation4], 128
    $region25: #{tpu_custom_call.1} parent=1 // pred_fallthru
      _
    %139 = vsyncpa [#allocation3], 1
    %140 = vsyncpa [#allocation6], 1
    %141 = vsyncpa [#allocation4], 1

// kernel: tpu_custom_call.1
$region0: #{tpu_custom_call.1}
  #allocation0 [shape = 'u32[]', space=smem, size = 0x4, offset = 0x4, fixed_abs, tag = 'smem constant byte address 0x4 - core index']
  #allocation1 [shape = 'u32[144,128]{1,0:T(1,128)}', space=vmem, size = 0x12000, scoped, tag = 'internal scratch']
  %s0 = inlined_call_operand.hbm [shape: f32[8,128], index: 0, kind: input, shape index: {}]
  %s1 = inlined_call_operand.hbm [shape: f32[128,128], index: 1, kind: input, shape index: {}]
  %s2 = inlined_call_operand.hbm [shape: f32[8,128], index: 2, kind: output, shape index: {}]
  %s3 = sld [smem:[#allocation0]]
  $region26: #{tpu_custom_call.1} parent=0
    _
  %s5 = ssub.s32 1, %s3
  %s6 = scalar_select 0, %s5, %s3
  $region1: #{tpu_custom_call.1} parent=0
    #allocation2 [shape = 'u8[4096]{0}', space=vmem, size = 0x1000, scoped, tag = 'input window, operand 0, single buffered']
    #allocation3 [shape = 's32[1]{0}', space=sflag, size = 0x4, scoped, tag = 'scoped memory for tpu_custom_call.1']
    #allocation4 [shape = 's32[1]{0}', space=sflag, size = 0x4, scoped, tag = 'scoped memory for tpu_custom_call.1']
    #allocation5 [shape = 'u8[65536]{0}', space=vmem, size = 0x10000, scoped, tag = 'input window, operand 1, single buffered']
    #allocation6 [shape = 's32[1]{0}', space=sflag, size = 0x4, scoped, tag = 'scoped memory for tpu_custom_call.1']
    #allocation7 [shape = 'u8[4096]{0}', space=vmem, size = 0x1000, scoped, tag = 'output window, operand 0, single buffered']
    %7 = vsyncpa [#allocation3], 0
    %8 = vsyncpa [#allocation6], 0
    %9 = vsyncpa [#allocation4], 0
    // Predicated region
    $region2: #{tpu_custom_call.1} parent=1 // pred_check
      _
    $region3: #{tpu_custom_call.1} parent=1 // pred_check_branch
      %11 = sbr.rel (0) target = $region5
    $region4: #{tpu_custom_call.1} parent=1 // pred_region
      %s13 = ssub.s32 128, 128
      %14 = vsyncadd [#allocation3], %s13
      %s16 = sshll.u32 [#allocation2], 4
      %s17 = int_to_ptr.vmem [resolvable:$true] %s16
      %19 = dma.hbm_to_vmem [thread:$0]  %s0, 128, %s17, [#allocation3]
    $region5: #{tpu_custom_call.1} parent=1 // pred_fallthru
      _
    // Predicated region
    $region6: #{tpu_custom_call.1} parent=1 // pred_check
      _
    $region7: #{tpu_custom_call.1} parent=1 // pred_check_branch
      %21 = sbr.rel (0) target = $region9
    $region8: #{tpu_custom_call.1} parent=1 // pred_region
      %s23 = ssub.s32 2048, 2048
      %24 = vsyncadd [#allocation6], %s23
      %s25 = sshll.u32 [#allocation5], 4
      %s26 = int_to_ptr.vmem [resolvable:$true] %s25
      %31 = dma.hbm_to_vmem [thread:$0]  %s1, 2048, %s26, [#allocation6], 128, 128, 8
    $region9: #{tpu_custom_call.1} parent=1 // pred_fallthru
      _
    // Predicated region
    $region10: #{tpu_custom_call.1} parent=1 // pred_check
      _
    $region11: #{tpu_custom_call.1} parent=1 // pred_check_branch
      %33 = sbr.rel (0) target = $region13
    $region12: #{tpu_custom_call.1} parent=1 // pred_region
      %34 = dma.done [#allocation3], 128
    $region13: #{tpu_custom_call.1} parent=1 // pred_fallthru
      _
    // Predicated region
    $region14: #{tpu_custom_call.1} parent=1 // pred_check
      _
    $region15: #{tpu_custom_call.1} parent=1 // pred_check_branch
      %36 = sbr.rel (0) target = $region17
    $region16: #{tpu_custom_call.1} parent=1 // pred_region
      %37 = dma.done [#allocation6], 2048
    $region17: #{tpu_custom_call.1} parent=1 // pred_fallthru
      _
    %v38 = vld [vmem:[#allocation2] sm:$0xff]
    %v39 = vld [vmem:[#allocation5] sm:$0xff]
    %v40 = vld [vmem:[#allocation5 + $0x8] sm:$0xff]
    %v41 = vld [vmem:[#allocation5 + $0x10] sm:$0xff]
    %v42 = vld [vmem:[#allocation5 + $0x18] sm:$0xff]
    %v43 = vld [vmem:[#allocation5 + $0x20] sm:$0xff]
    %v44 = vld [vmem:[#allocation5 + $0x28] sm:$0xff]
    %v45 = vld [vmem:[#allocation5 + $0x30] sm:$0xff]
    %v46 = vld [vmem:[#allocation5 + $0x38] sm:$0xff]
    %v47 = vld [vmem:[#allocation5 + $0x40] sm:$0xff]
    %v48 = vld [vmem:[#allocation5 + $0x48] sm:$0xff]
    %v49 = vld [vmem:[#allocation5 + $0x50] sm:$0xff]
    %v50 = vld [vmem:[#allocation5 + $0x58] sm:$0xff]
    %v51 = vld [vmem:[#allocation5 + $0x60] sm:$0xff]
    %v52 = vld [vmem:[#allocation5 + $0x68] sm:$0xff]
    %v53 = vld [vmem:[#allocation5 + $0x70] sm:$0xff]
    %v54 = vld [vmem:[#allocation5 + $0x78] sm:$0xff]
    %55 = vmatprep.subr.mxu0 0.0
    %56 = vmatpush1.msra.mxu0 %v39
    %57 = vmatprep.subr.mxu0 0.0
    %58 = vmatpush1.msra.mxu0 %v40
    %59 = vmatprep.subr.mxu0 0.0
    %60 = vmatpush1.msra.mxu0 %v41
    %61 = vmatprep.subr.mxu0 0.0
    %62 = vmatpush1.msra.mxu0 %v42
    %63 = vmatprep.subr.mxu0 0.0
    %64 = vmatpush1.msra.mxu0 %v43
    %65 = vmatprep.subr.mxu0 0.0
    %66 = vmatpush1.msra.mxu0 %v44
    %67 = vmatprep.subr.mxu0 0.0
    %68 = vmatpush1.msra.mxu0 %v45
    %69 = vmatprep.subr.mxu0 0.0
    %70 = vmatpush1.msra.mxu0 %v46
    %71 = vmatprep.subr.mxu0 0.0
    %72 = vmatpush1.msra.mxu0 %v47
    %73 = vmatprep.subr.mxu0 0.0
    %74 = vmatpush1.msra.mxu0 %v48
    %75 = vmatprep.subr.mxu0 0.0
    %76 = vmatpush1.msra.mxu0 %v49
    %77 = vmatprep.subr.mxu0 0.0
    %78 = vmatpush1.msra.mxu0 %v50
    %79 = vmatprep.subr.mxu0 0.0
    %80 = vmatpush1.msra.mxu0 %v51
    %81 = vmatprep.subr.mxu0 0.0
    %82 = vmatpush1.msra.mxu0 %v52
    %83 = vmatprep.subr.mxu0 0.0
    %84 = vmatpush1.msra.mxu0 %v53
    %85 = vmatprep.subr.mxu0 0.0
    %86 = vmatpush1.msra.mxu0 %v54
    %87 = vmatprep.subr.mxu0 0.0
    %88 = vmatpush1.msra.mxu0 0.0
    %89 = vmatprep.subr.mxu0 0.0
    %90 = vmatpush1.msra.mxu0 0.0
    %91 = vmatprep.subr.mxu0 0.0
    %92 = vmatpush1.msra.mxu0 0.0
    %93 = vmatprep.subr.mxu0 0.0
    %94 = vmatpush1.msra.mxu0 0.0
    %95 = vmatprep.subr.mxu0 0.0
    %96 = vmatpush1.msra.mxu0 0.0
    %97 = vmatprep.subr.mxu0 0.0
    %98 = vmatpush1.msra.mxu0 0.0
    %99 = vmatprep.subr.mxu0 0.0
    %100 = vmatpush1.msra.mxu0 0.0
    %101 = vmatprep.subr.mxu0 0.0
    %102 = vmatpush1.msra.mxu0 0.0
    %103 = vmatprep.subr.mxu0 0.0
    %104 = vmatpush1.msra.mxu0 0.0
    %105 = vmatprep.subr.mxu0 0.0
    %106 = vmatpush1.msra.mxu0 0.0
    %107 = vmatprep.subr.mxu0 0.0
    %108 = vmatpush1.msra.mxu0 0.0
    %109 = vmatprep.subr.mxu0 0.0
    %110 = vmatpush1.msra.mxu0 0.0
    %111 = vmatprep.subr.mxu0 0.0
    %112 = vmatpush1.msra.mxu0 0.0
    %113 = vmatprep.subr.mxu0 0.0
    %114 = vmatpush1.msra.mxu0 0.0
    %115 = vmatprep.subr.mxu0 0.0
    %116 = vmatpush1.msra.mxu0 0.0
    %117 = vmatprep.subr.mxu0 0.0
    %118 = vmatpush1.msra.mxu0 0.0
    %119 = vmatprep.mubr.f32.mxu0 0.0
    %120 = vmatmul.mubr.f32.gmra.mrb[0].mxu0 %v38
    %v121 = vpop.f32.mrb[0].mxu0
    %v122 = vadd.f32 0.0, %v121
    %v123 = vpop.f32.mrb[0].mxu0
    %124 = vdwg.mxu0
    %125 = vst [vmem:[#allocation7] sm:$0xff] %v122
    // Predicated region
    $region18: #{tpu_custom_call.1} parent=1 // pred_check
      _
    $region19: #{tpu_custom_call.1} parent=1 // pred_check_branch
      %127 = sbr.rel (0) target = $region21
    $region20: #{tpu_custom_call.1} parent=1 // pred_region
      %s129 = ssub.s32 128, 128
      %130 = vsyncadd [#allocation4], %s129
      %s132 = sshll.u32 [#allocation7], 4
      %s133 = int_to_ptr.vmem [resolvable:$true] %s132
      %135 = dma.vmem_to_hbm [thread:$0]  %s133, 128, %s2, [#allocation4]
    $region21: #{tpu_custom_call.1} parent=1 // pred_fallthru
      _
    // Predicated region
    $region22: #{tpu_custom_call.1} parent=1 // pred_check
      _
    $region23: #{tpu_custom_call.1} parent=1 // pred_check_branch
      %137 = sbr.rel (0) target = $region25
    $region24: #{tpu_custom_call.1} parent=1 // pred_region
      %138 = dma.done [#allocation4], 128
    $region25: #{tpu_custom_call.1} parent=1 // pred_fallthru
      _
    %139 = vsyncpa [#allocation3], 1
    %140 = vsyncpa [#allocation6], 1
    %141 = vsyncpa [#allocation4], 1

</llo_original>
